<compile_context>
chip_gen: v7x
topology: tpu7x:2x2x1
jax: 0.10.0
libtpu: 0.0.40
codegen_flags: <defaults>
</compile_context>

<pallas_src>
import jax
import jax.numpy as jnp
from jax.experimental import pallas as pl
from jax.experimental.pallas import tpu as pltpu


_SELU_ALPHA = 1.6732632423543772
_SELU_SCALE = 1.0507009873554805

_HID_P = 100          # hidden width of the part-id branch
_HID_F = 50           # hidden width of the family-id branch
_HID = _HID_P + _HID_F  # 150 (fused hidden width)
_OUT = 4              # 2 + 2 concatenated outputs


def _selu(x):
    # exp() on the positive side is discarded by the select (no NaN leak).
    return _SELU_SCALE * jnp.where(x > 0, x, _SELU_ALPHA * (jnp.exp(x) - 1.0))


def _node_encoder_kernel(x_ref, w1_ref, b1_ref, w2_ref, b2_ref, out_ref):
    """Fused block-diagonal forward: two matmuls per batch tile."""
    h = jnp.dot(x_ref[...], w1_ref[...], preferred_element_type=jnp.float32)
    h = _selu(h + b1_ref[...])
    y = jnp.dot(h, w2_ref[...], preferred_element_type=jnp.float32)
    out_ref[...] = _selu(y + b2_ref[...])


def node_encoder(x_part, x_family, params, *, tile_n=1024):
    """Pallas NodeEncoder. x_part: (N, n_part_ids), x_family: (N, n_family_ids)."""
    n = x_part.shape[0]
    n_part = x_part.shape[1]
    n_family = x_family.shape[1]
    in_dim = n_part + n_family

    # Pack the two inputs into one slab: single DMA stream, single matmul LHS.
    x = jnp.concatenate(
        [x_part.astype(jnp.float32), x_family.astype(jnp.float32)], axis=-1)

    # Build the fused block-diagonal weights wrapper-side (negligible cost).
    # Off-diagonal blocks are exactly zero so the branches cannot leak.
    w1 = jnp.zeros((in_dim, _HID), jnp.float32)
    w1 = w1.at[:n_part, :_HID_P].set(params["w1p"])
    w1 = w1.at[n_part:, _HID_P:].set(params["w1f"])
    b1 = jnp.concatenate([params["b1p"], params["b1f"]], axis=-1)  # (1, 150)

    w2 = jnp.zeros((_HID, _OUT), jnp.float32)
    w2 = w2.at[:_HID_P, :2].set(params["w2p"])
    w2 = w2.at[_HID_P:, 2:].set(params["w2f"])
    b2 = jnp.concatenate([params["b2p"], params["b2f"]], axis=-1)  # (1, 4)

    # Batch tiling: tile must be a multiple of 8 sublanes; pad N up to a
    # whole number of tiles (no runtime OOB checks on VMEM refs).
    tile_n = max(8, min(tile_n, pl.cdiv(n, 8) * 8))
    n_pad = pl.cdiv(n, tile_n) * tile_n
    if n_pad != n:
        x = jnp.pad(x, ((0, n_pad - n), (0, 0)))
    grid = (n_pad // tile_n,)

    flops = 2 * n_pad * (in_dim * _HID + _HID * _OUT)
    transcendentals = n_pad * (_HID + _OUT)                 # one exp per SELU lane
    bytes_accessed = 4 * (n_pad * in_dim + n_pad * _OUT
                          + in_dim * _HID + _HID * _OUT + _HID + _OUT)

    out = pl.pallas_call(
        _node_encoder_kernel,
        out_shape=jax.ShapeDtypeStruct((n_pad, _OUT), jnp.float32),
        grid=grid,
        in_specs=[
            # Batch-tiled activations (double-buffered by the pipeline).
            pl.BlockSpec((tile_n, in_dim), lambda i: (i, 0)),
            # Weights/biases: constant index_map -> VMEM-resident across steps.
            pl.BlockSpec((in_dim, _HID), lambda i: (0, 0)),
            pl.BlockSpec((1, _HID), lambda i: (0, 0)),
            pl.BlockSpec((_HID, _OUT), lambda i: (0, 0)),
            pl.BlockSpec((1, _OUT), lambda i: (0, 0)),
        ],
        out_specs=pl.BlockSpec((tile_n, _OUT), lambda i: (i, 0)),
        compiler_params=pltpu.CompilerParams(
            dimension_semantics=("parallel",),       # megacore split on v7x
            vmem_limit_bytes=32 * 1024 * 1024,       # safe on v5e/v6e/v7x
        ),
        cost_estimate=pl.CostEstimate(
            flops=flops,
            transcendentals=transcendentals,
            bytes_accessed=bytes_accessed,
        ),
    )(x, w1, b1, w2, b2)
    return out[:n]


def init_params(key, n_part_ids, n_family_ids):
    """Deterministic init mimicking nn.Linear's uniform(-1/sqrt(fan_in), ...).

    Weights are stored already transposed to (in, out); biases as (1, out).
    """
    def linear(key, fan_in, fan_out):
        kw, kb = jax.random.split(key)
        bound = 1.0 / jnp.sqrt(fan_in)
        w = jax.random.uniform(kw, (fan_in, fan_out), jnp.float32, -bound, bound)
        b = jax.random.uniform(kb, (1, fan_out), jnp.float32, -bound, bound)
        return w, b

    k1, k2, k3, k4 = jax.random.split(key, 4)
    w1p, b1p = linear(k1, n_part_ids, _HID_P)
    w2p, b2p = linear(k2, _HID_P, 2)
    w1f, b1f = linear(k3, n_family_ids, _HID_F)
    w2f, b2f = linear(k4, _HID_F, 2)
    return dict(w1p=w1p, b1p=b1p, w2p=w2p, b2p=b2p,
                w1f=w1f, b1f=b1f, w2f=w2f, b2f=b2f)


def node_encoder_ref(x_part, x_family, p):
    """Pure-JAX reference (separate branches, like the PyTorch module)."""
    hp = _selu(x_part @ p["w1p"] + p["b1p"])
    yp = _selu(hp @ p["w2p"] + p["b2p"])
    hf = _selu(x_family @ p["w1f"] + p["b1f"])
    yf = _selu(hf @ p["w2f"] + p["b2f"])
    return jnp.concatenate([yp, yf], axis=-1)


if __name__ == "__main__":
    n_part_ids, n_family_ids = 16, 8

    key = jax.random.PRNGKey(0)
    k_params, k_xp, k_xf = jax.random.split(key, 3)
    params = init_params(k_params, n_part_ids, n_family_ids)

    # Case 1: batch that is a multiple of 8.
    batch = 8
    x_part = jax.random.normal(k_xp, (batch, n_part_ids), jnp.float32)
    x_family = jax.random.normal(k_xf, (batch, n_family_ids), jnp.float32)
    out = jax.block_until_ready(node_encoder(x_part, x_family, params))
    ref = node_encoder_ref(x_part, x_family, params)
    assert out.shape == (batch, 4), out.shape
    assert jnp.allclose(out, ref, atol=1e-5, rtol=1e-5), "mismatch (batch=8)"

    # Case 2: batch not a multiple of the tile -> exercises the padding path.
    batch2 = 13
    x_part2 = jax.random.normal(k_xp, (batch2, n_part_ids), jnp.float32)
    x_family2 = jax.random.normal(k_xf, (batch2, n_family_ids), jnp.float32)
    out2 = jax.block_until_ready(node_encoder(x_part2, x_family2, params))
    ref2 = node_encoder_ref(x_part2, x_family2, params)
    assert out2.shape == (batch2, 4), out2.shape
    assert jnp.allclose(out2, ref2, atol=1e-5, rtol=1e-5), "mismatch (batch=13)"

    print("KERNEL_OK")
</pallas_src>

<mosaic_0001>
module attributes {stable_mosaic.version = 11 : i64} {
  func.func @_node_encoder_kernel(%arg0: i32, %arg1: memref<8x24xf32, #tpu.memory_space<vmem>>, %arg2: memref<24x150xf32, #tpu.memory_space<vmem>>, %arg3: memref<1x150xf32, #tpu.memory_space<vmem>>, %arg4: memref<150x4xf32, #tpu.memory_space<vmem>>, %arg5: memref<1x4xf32, #tpu.memory_space<vmem>>, %arg6: memref<8x4xf32, #tpu.memory_space<vmem>>) attributes {dimension_semantics = [#tpu.dimension_semantics<parallel>], iteration_bounds = array<i64: 1>, scalar_prefetch = 0 : i64, scratch_operands = 0 : i64, tpu.core_type = #tpu.core_type<tc>, window_params = [{transform_indices = @transform_0, window_bounds = array<i64: 8, 24>}, {pipeline_mode = #tpu.pipeline_mode<synchronous>, transform_indices = @transform_1, window_bounds = array<i64: 24, 150>}, {pipeline_mode = #tpu.pipeline_mode<synchronous>, transform_indices = @transform_2, window_bounds = array<i64: 1, 150>}, {pipeline_mode = #tpu.pipeline_mode<synchronous>, transform_indices = @transform_3, window_bounds = array<i64: 150, 4>}, {pipeline_mode = #tpu.pipeline_mode<synchronous>, transform_indices = @transform_4, window_bounds = array<i64: 1, 4>}, {transform_indices = @transform_5, window_bounds = array<i64: 8, 4>}]} {
    %c0 = arith.constant 0 : index
    %c0_0 = arith.constant 0 : index
    %0 = vector.load %arg1[%c0, %c0_0] : memref<8x24xf32, #tpu.memory_space<vmem>>, vector<8x24xf32>
    %c0_1 = arith.constant 0 : index
    %c0_2 = arith.constant 0 : index
    %1 = vector.load %arg2[%c0_1, %c0_2] : memref<24x150xf32, #tpu.memory_space<vmem>>, vector<24x150xf32>
    %cst = arith.constant dense<0.000000e+00> : vector<8x150xf32>
    %2 = tpu.matmul %0, %1, %cst {dimension_numbers = #tpu.dot_dimension_numbers<[1], [0], [0], [1], [0, 0, 1, 1], [], []>} : vector<8x24xf32>, vector<24x150xf32>, vector<8x150xf32> -> vector<8x150xf32>
    %c0_3 = arith.constant 0 : index
    %c0_4 = arith.constant 0 : index
    %3 = vector.load %arg3[%c0_3, %c0_4] : memref<1x150xf32, #tpu.memory_space<vmem>>, vector<1x150xf32>
    %4 = vector.broadcast %3 : vector<1x150xf32> to vector<8x150xf32>
    %5 = arith.addf %2, %4 : vector<8x150xf32>
    %cst_5 = arith.constant 0.000000e+00 : f32
    %6 = vector.broadcast %cst_5 : f32 to vector<8x150xf32>
    %7 = arith.cmpf ogt, %5, %6 : vector<8x150xf32>
    %8 = math.exp %5 : vector<8x150xf32>
    %cst_6 = arith.constant 1.000000e+00 : f32
    %9 = vector.broadcast %cst_6 : f32 to vector<8x150xf32>
    %10 = arith.subf %8, %9 : vector<8x150xf32>
    %cst_7 = arith.constant 1.67326319 : f32
    %11 = vector.broadcast %cst_7 : f32 to vector<8x150xf32>
    %12 = arith.mulf %11, %10 : vector<8x150xf32>
    %13 = arith.select %7, %5, %12 : vector<8x150xi1>, vector<8x150xf32>
    %cst_8 = arith.constant 1.05070102 : f32
    %14 = vector.broadcast %cst_8 : f32 to vector<8x150xf32>
    %15 = arith.mulf %14, %13 : vector<8x150xf32>
    %c0_9 = arith.constant 0 : index
    %c0_10 = arith.constant 0 : index
    %16 = vector.load %arg4[%c0_9, %c0_10] : memref<150x4xf32, #tpu.memory_space<vmem>>, vector<150x4xf32>
    %cst_11 = arith.constant dense<0.000000e+00> : vector<8x4xf32>
    %17 = tpu.matmul %15, %16, %cst_11 {dimension_numbers = #tpu.dot_dimension_numbers<[1], [0], [0], [1], [0, 0, 1, 1], [], []>} : vector<8x150xf32>, vector<150x4xf32>, vector<8x4xf32> -> vector<8x4xf32>
    %c0_12 = arith.constant 0 : index
    %c0_13 = arith.constant 0 : index
    %18 = vector.load %arg5[%c0_12, %c0_13] : memref<1x4xf32, #tpu.memory_space<vmem>>, vector<1x4xf32>
    %19 = vector.broadcast %18 : vector<1x4xf32> to vector<8x4xf32>
    %20 = arith.addf %17, %19 : vector<8x4xf32>
    %cst_14 = arith.constant 0.000000e+00 : f32
    %21 = vector.broadcast %cst_14 : f32 to vector<8x4xf32>
    %22 = arith.cmpf ogt, %20, %21 : vector<8x4xf32>
    %23 = math.exp %20 : vector<8x4xf32>
    %cst_15 = arith.constant 1.000000e+00 : f32
    %24 = vector.broadcast %cst_15 : f32 to vector<8x4xf32>
    %25 = arith.subf %23, %24 : vector<8x4xf32>
    %cst_16 = arith.constant 1.67326319 : f32
    %26 = vector.broadcast %cst_16 : f32 to vector<8x4xf32>
    %27 = arith.mulf %26, %25 : vector<8x4xf32>
    %28 = arith.select %22, %20, %27 : vector<8x4xi1>, vector<8x4xf32>
    %cst_17 = arith.constant 1.05070102 : f32
    %29 = vector.broadcast %cst_17 : f32 to vector<8x4xf32>
    %30 = arith.mulf %29, %28 : vector<8x4xf32>
    %c0_18 = arith.constant 0 : index
    %c0_19 = arith.constant 0 : index
    %31 = vector.load %arg6[%c0_18, %c0_19] : memref<8x4xf32, #tpu.memory_space<vmem>>, vector<8x4xf32>
    tpu.vector_store %arg6[%c0_18, %c0_19], %30 {strides = array<i32>} : memref<8x4xf32, #tpu.memory_space<vmem>>, vector<8x4xf32>,
    return
  }
  func.func @transform_0(%arg0: i32) -> (i32, i32) {
    %c0_i32 = arith.constant 0 : i32
    %c0_i32_0 = arith.constant 0 : i32
    return %arg0, %c0_i32 : i32, i32
  }
  func.func @transform_1(%arg0: i32) -> (i32, i32) {
    %c0_i32 = arith.constant 0 : i32
    %c0_i32_0 = arith.constant 0 : i32
    %c0_i32_1 = arith.constant 0 : i32
    return %c0_i32, %c0_i32_0 : i32, i32
  }
  func.func @transform_2(%arg0: i32) -> (i32, i32) {
    %c0_i32 = arith.constant 0 : i32
    %c0_i32_0 = arith.constant 0 : i32
    %c0_i32_1 = arith.constant 0 : i32
    return %c0_i32, %c0_i32_0 : i32, i32
  }
  func.func @transform_3(%arg0: i32) -> (i32, i32) {
    %c0_i32 = arith.constant 0 : i32
    %c0_i32_0 = arith.constant 0 : i32
    %c0_i32_1 = arith.constant 0 : i32
    return %c0_i32, %c0_i32_0 : i32, i32
  }
  func.func @transform_4(%arg0: i32) -> (i32, i32) {
    %c0_i32 = arith.constant 0 : i32
    %c0_i32_0 = arith.constant 0 : i32
    %c0_i32_1 = arith.constant 0 : i32
    return %c0_i32, %c0_i32_0 : i32, i32
  }
  func.func @transform_5(%arg0: i32) -> (i32, i32) {
    %c0_i32 = arith.constant 0 : i32
    %c0_i32_0 = arith.constant 0 : i32
    return %arg0, %c0_i32 : i32, i32
  }
}

</mosaic_0001>

<llo_original>
// kernel: tpu_custom_call.1
$region0: #{tpu_custom_call.1}
  #allocation0 [shape = 'u32[]', space=smem, size = 0x4, offset = 0x4, fixed_abs, tag = 'smem constant byte address 0x4 - core index']
  #allocation1 [shape = 'u32[144,128]{1,0:T(1,128)}', space=vmem, size = 0x12000, scoped, tag = 'internal scratch']
  %s0 = inlined_call_operand.vmem [shape: f32[8,24], index: 0, kind: input, shape index: {}]
  %s1 = inlined_call_operand.vmem [shape: f32[24,150], index: 1, kind: input, shape index: {}]
  %s2 = inlined_call_operand.vmem [shape: f32[1,150], index: 2, kind: input, shape index: {}]
  %s3 = inlined_call_operand.vmem [shape: f32[150,4], index: 3, kind: input, shape index: {}]
  %s4 = inlined_call_operand.vmem [shape: f32[1,4], index: 4, kind: input, shape index: {}]
  %s5 = inlined_call_operand.vmem [shape: f32[8,4], index: 5, kind: output, shape index: {}]
  %s6 = sld [smem:[#allocation0]]
  $region30: #{tpu_custom_call.1} parent=0
    _
  %s8 = ssub.s32 1, %s6
  %s9 = scalar_select 0, %s8, %s6
  // Predicated region
  $region2: #{tpu_custom_call.1} parent=0 // pred_check
    _
  $region3: #{tpu_custom_call.1} parent=0 // pred_check_branch
    %11 = sbr.rel (0) target = $region5
  $region4: #{tpu_custom_call.1} parent=0 // pred_region
    _
  $region5: #{tpu_custom_call.1} parent=0 // pred_fallthru
    _
  // Predicated region
  $region6: #{tpu_custom_call.1} parent=0 // pred_check
    _
  $region7: #{tpu_custom_call.1} parent=0 // pred_check_branch
    %13 = sbr.rel (0) target = $region9
  $region8: #{tpu_custom_call.1} parent=0 // pred_region
    _
  $region9: #{tpu_custom_call.1} parent=0 // pred_fallthru
    _
  // Predicated region
  $region10: #{tpu_custom_call.1} parent=0 // pred_check
    _
  $region11: #{tpu_custom_call.1} parent=0 // pred_check_branch
    %15 = sbr.rel (0) target = $region13
  $region12: #{tpu_custom_call.1} parent=0 // pred_region
    _
  $region13: #{tpu_custom_call.1} parent=0 // pred_fallthru
    _
  // Predicated region
  $region14: #{tpu_custom_call.1} parent=0 // pred_check
    _
  $region15: #{tpu_custom_call.1} parent=0 // pred_check_branch
    %17 = sbr.rel (0) target = $region17
  $region16: #{tpu_custom_call.1} parent=0 // pred_region
    _
  $region17: #{tpu_custom_call.1} parent=0 // pred_fallthru
    _
  // Predicated region
  $region18: #{tpu_custom_call.1} parent=0 // pred_check
    _
  $region19: #{tpu_custom_call.1} parent=0 // pred_check_branch
    %19 = sbr.rel (0) target = $region21
  $region20: #{tpu_custom_call.1} parent=0 // pred_region
    _
  $region21: #{tpu_custom_call.1} parent=0 // pred_fallthru
    _
  %v20 = vld [vmem:[%s0] sm:$0xff]
  %v21 = vld [vmem:[%s1] sm:$0xff]
  %v22 = vld [vmem:[%s1 + $0x8] sm:$0xff]
  %v23 = vld [vmem:[%s1 + $0x10] sm:$0xff]
  %v24 = vld [vmem:[%s1 + $0x18] sm:$0xff]
  %v25 = vld [vmem:[%s1 + $0x20] sm:$0xff]
  %v26 = vld [vmem:[%s1 + $0x28] sm:$0xff]
  %v27 = vld [vmem:[%s2] sm:$0x3]
  %v29 = vlaneseq
  %v30 = vshrl.u32 %v29, 7
  %v31 = vsub.s32 0, %v30
  %v32 = vrot.slane %v27, %v31
  %v33 = vlaneseq
  %v34 = vshrl.u32 %v33, 7
  %v35 = vsub.s32 1, %v34
  %v36 = vrot.slane %v27, %v35
  %vm39 = vcmask 195584
  %v41 = vsel %vm39, %v20, 0
  %43 = vmatprep.subr.mxu0 %v22
  %44 = vmatpush1.msra.mxu0 %v21
  %45 = vmatprep.subr.mxu0 %v24
  %46 = vmatpush1.msra.mxu0 %v23
  %47 = vmatprep.subr.mxu0 %v26
  %48 = vmatpush1.msra.mxu0 %v25
  %49 = vmatprep.subr.mxu0 0.0
  %50 = vmatpush1.msra.mxu0 0.0
  %51 = vmatprep.subr.mxu0 0.0
  %52 = vmatpush1.msra.mxu0 0.0
  %53 = vmatprep.subr.mxu0 0.0
  %54 = vmatpush1.msra.mxu0 0.0
  %55 = vmatprep.subr.mxu0 0.0
  %56 = vmatpush1.msra.mxu0 0.0
  %57 = vmatprep.subr.mxu0 0.0
  %58 = vmatpush1.msra.mxu0 0.0
  %59 = vmatprep.subr.mxu0 0.0
  %60 = vmatpush1.msra.mxu0 0.0
  %61 = vmatprep.subr.mxu0 0.0
  %62 = vmatpush1.msra.mxu0 0.0
  %63 = vmatprep.subr.mxu0 0.0
  %64 = vmatpush1.msra.mxu0 0.0
  %65 = vmatprep.subr.mxu0 0.0
  %66 = vmatpush1.msra.mxu0 0.0
  %67 = vmatprep.subr.mxu0 0.0
  %68 = vmatpush1.msra.mxu0 0.0
  %69 = vmatprep.subr.mxu0 0.0
  %70 = vmatpush1.msra.mxu0 0.0
  %71 = vmatprep.subr.mxu0 0.0
  %72 = vmatpush1.msra.mxu0 0.0
  %73 = vmatprep.subr.mxu0 0.0
  %74 = vmatpush1.msra.mxu0 0.0
  %75 = vmatprep.subr.mxu0 0.0
  %76 = vmatpush1.msra.mxu0 0.0
  %77 = vmatprep.subr.mxu0 0.0
  %78 = vmatpush1.msra.mxu0 0.0
  %79 = vmatprep.subr.mxu0 0.0
  %80 = vmatpush1.msra.mxu0 0.0
  %81 = vmatprep.subr.mxu0 0.0
  %82 = vmatpush1.msra.mxu0 0.0
  %83 = vmatprep.subr.mxu0 0.0
  %84 = vmatpush1.msra.mxu0 0.0
  %85 = vmatprep.subr.mxu0 0.0
  %86 = vmatpush1.msra.mxu0 0.0
  %87 = vmatprep.subr.mxu0 0.0
  %88 = vmatpush1.msra.mxu0 0.0
  %89 = vmatprep.subr.mxu0 0.0
  %90 = vmatpush1.msra.mxu0 0.0
  %91 = vmatprep.subr.mxu0 0.0
  %92 = vmatpush1.msra.mxu0 0.0
  %93 = vmatprep.subr.mxu0 0.0
  %94 = vmatpush1.msra.mxu0 0.0
  %95 = vmatprep.subr.mxu0 0.0
  %96 = vmatpush1.msra.mxu0 0.0
  %97 = vmatprep.subr.mxu0 0.0
  %98 = vmatpush1.msra.mxu0 0.0
  %99 = vmatprep.subr.mxu0 0.0
  %100 = vmatpush1.msra.mxu0 0.0
  %101 = vmatprep.subr.mxu0 0.0
  %102 = vmatpush1.msra.mxu0 0.0
  %103 = vmatprep.subr.mxu0 0.0
  %104 = vmatpush1.msra.mxu0 0.0
  %105 = vmatprep.subr.mxu0 0.0
  %106 = vmatpush1.msra.mxu0 0.0
  %107 = vmatprep.mubr.f32.mxu0 0.0
  %108 = vmatmul.mubr.f32.gmra.mrb[0].mxu0 %v41
  %v109 = vpop.f32.mrb[0].mxu0
  %v110 = vadd.f32 %v32, %v109
  %v111 = vpop.f32.mrb[0].mxu0
  %v112 = vadd.f32 %v36, %v111
  %113 = vdwg.mxu0
  %vm114 = vcmp.gt.f32.partialorder %v110, 0.0
  %vm115 = vcmp.gt.f32.partialorder %v112, 0.0
  %v116 = vmul.f32 %v110, 1.442695
  %v117 = vpow.pop %v116
  %v118 = vmul.f32 %v112, 1.442695
  %v119 = vpow.pop %v118
  %v120 = vsub.f32 %v117, 1.0
  %v121 = vsub.f32 %v119, 1.0
  %v122 = vmul.f32 %v120, 1.6732632
  %v123 = vmul.f32 %v121, 1.6732632
  %v124 = vsel %vm114, %v110, %v122
  %v125 = vsel %vm115, %v112, %v123
  %v126 = vmul.f32 %v124, 1.050701
  %v127 = vmul.f32 %v125, 1.050701
  %v128 = vld [vmem:[%s3] sm:$0xff]
  %v129 = vld [vmem:[%s3 + $0x8] sm:$0xff]
  %v130 = vld [vmem:[%s3 + $0x10] sm:$0xff]
  %v131 = vld [vmem:[%s3 + $0x18] sm:$0xff]
  %v132 = vld [vmem:[%s3 + $0x20] sm:$0xff]
  %v133 = vld [vmem:[%s3 + $0x28] sm:$0xff]
  %v134 = vld [vmem:[%s3 + $0x30] sm:$0xff]
  %v135 = vld [vmem:[%s3 + $0x38] sm:$0xff]
  %v136 = vld [vmem:[%s3 + $0x40] sm:$0xff]
  %v137 = vld [vmem:[%s3 + $0x48] sm:$0xff]
  %v138 = vld [vmem:[%s3 + $0x50] sm:$0xff]
  %v139 = vld [vmem:[%s3 + $0x58] sm:$0xff]
  %v140 = vld [vmem:[%s3 + $0x60] sm:$0xff]
  %v141 = vld [vmem:[%s3 + $0x68] sm:$0xff]
  %v142 = vld [vmem:[%s3 + $0x70] sm:$0xff]
  %v143 = vld [vmem:[%s3 + $0x78] sm:$0xff]
  %v144 = vld [vmem:[%s3 + $0x80] sm:$0xff]
  %v145 = vld [vmem:[%s3 + $0x88] sm:$0xff]
  %v146 = vld [vmem:[%s3 + $0x90] sm:$0x3f]
  %v147 = vld [vmem:[%s4] sm:$0x1]
  %v149 = vlaneseq
  %v150 = vshrl.u32 %v149, 7
  %v151 = vsub.s32 0, %v150
  %v152 = vrot.slane %v147, %v151
  %vm154 = vcmask 179200
  %v156 = vsel %vm154, %v127, 0
  %vm158 = vcmask 1045504
  %v160 = vsel %vm158, %v146, 0
  %162 = vmatprep.subr.mxu0 0.0
  %163 = vmatpush1.msra.mxu0 %v128
  %164 = vmatprep.subr.mxu0 0.0
  %165 = vmatpush1.msra.mxu0 %v129
  %166 = vmatprep.subr.mxu0 0.0
  %167 = vmatpush1.msra.mxu0 %v130
  %168 = vmatprep.subr.mxu0 0.0
  %169 = vmatpush1.msra.mxu0 %v131
  %170 = vmatprep.subr.mxu0 0.0
  %171 = vmatpush1.msra.mxu0 %v132
  %172 = vmatprep.subr.mxu0 0.0
  %173 = vmatpush1.msra.mxu0 %v133
  %174 = vmatprep.subr.mxu0 0.0
  %175 = vmatpush1.msra.mxu0 %v134
  %176 = vmatprep.subr.mxu0 0.0
  %177 = vmatpush1.msra.mxu0 %v135
  %178 = vmatprep.subr.mxu0 0.0
  %179 = vmatpush1.msra.mxu0 %v136
  %180 = vmatprep.subr.mxu0 0.0
  %181 = vmatpush1.msra.mxu0 %v137
  %182 = vmatprep.subr.mxu0 0.0
  %183 = vmatpush1.msra.mxu0 %v138
  %184 = vmatprep.subr.mxu0 0.0
  %185 = vmatpush1.msra.mxu0 %v139
  %186 = vmatprep.subr.mxu0 0.0
  %187 = vmatpush1.msra.mxu0 %v140
  %188 = vmatprep.subr.mxu0 0.0
  %189 = vmatpush1.msra.mxu0 %v141
  %190 = vmatprep.subr.mxu0 0.0
  %191 = vmatpush1.msra.mxu0 %v142
  %192 = vmatprep.subr.mxu0 0.0
  %193 = vmatpush1.msra.mxu0 %v143
  %194 = vmatprep.subr.mxu0 0.0
  %195 = vmatpush1.msra.mxu0 %v144
  %196 = vmatprep.subr.mxu0 0.0
  %197 = vmatpush1.msra.mxu0 %v145
  %198 = vmatprep.subr.mxu0 0.0
  %199 = vmatpush1.msra.mxu0 %v160
  %200 = vmatprep.subr.mxu0 0.0
  %201 = vmatpush1.msra.mxu0 0.0
  %202 = vmatprep.subr.mxu0 0.0
  %203 = vmatpush1.msra.mxu0 0.0
  %204 = vmatprep.subr.mxu0 0.0
  %205 = vmatpush1.msra.mxu0 0.0
  %206 = vmatprep.subr.mxu0 0.0
  %207 = vmatpush1.msra.mxu0 0.0
  %208 = vmatprep.subr.mxu0 0.0
  %209 = vmatpush1.msra.mxu0 0.0
  %210 = vmatprep.subr.mxu0 0.0
  %211 = vmatpush1.msra.mxu0 0.0
  %212 = vmatprep.subr.mxu0 0.0
  %213 = vmatpush1.msra.mxu0 0.0
  %214 = vmatprep.subr.mxu0 0.0
  %215 = vmatpush1.msra.mxu0 0.0
  %216 = vmatprep.subr.mxu0 0.0
  %217 = vmatpush1.msra.mxu0 0.0
  %218 = vmatprep.subr.mxu0 0.0
  %219 = vmatpush1.msra.mxu0 0.0
  %220 = vmatprep.subr.mxu0 0.0
  %221 = vmatpush1.msra.mxu0 0.0
  %222 = vmatprep.subr.mxu0 0.0
  %223 = vmatpush1.msra.mxu0 0.0
  %224 = vmatprep.subr.mxu0 0.0
  %225 = vmatpush1.msra.mxu0 0.0
  %226 = vmatprep.mubr.f32.mxu0 %v156
  %227 = vmatmul.mubr.f32.gmra.mrb[0].mxu0 %v126
  %v228 = vpop.f32.mrb[0].mxu0
  %v229 = vadd.f32 %v152, %v228
  %v230 = vpop.f32.mrb[0].mxu0
  %231 = vdwg.mxu0
  %vm232 = vcmp.gt.f32.partialorder %v229, 0.0
  %v233 = vmul.f32 %v229, 1.442695
  %v234 = vpow.pop %v233
  %v235 = vsub.f32 %v234, 1.0
  %v236 = vmul.f32 %v235, 1.6732632
  %v237 = vsel %vm232, %v229, %v236
  %v238 = vmul.f32 %v237, 1.050701
  %vm239 = vcmask 31744
  %240 = vst.msk [vmem:[%s5] sm:$0xff] %vm239, %v238
  // Predicated region
  $region22: #{tpu_custom_call.1} parent=0 // pred_check
    _
  $region23: #{tpu_custom_call.1} parent=0 // pred_check_branch
    %242 = sbr.rel (0) target = $region25
  $region24: #{tpu_custom_call.1} parent=0 // pred_region
    _
  $region25: #{tpu_custom_call.1} parent=0 // pred_fallthru
    _
  // Predicated region
  $region26: #{tpu_custom_call.1} parent=0 // pred_check
    _
  $region27: #{tpu_custom_call.1} parent=0 // pred_check_branch
    %244 = sbr.rel (0) target = $region29
  $region28: #{tpu_custom_call.1} parent=0 // pred_region
    _
  $region29: #{tpu_custom_call.1} parent=0 // pred_fallthru
    _

</llo_original>
